<compile_context>
chip_gen: v5e
topology: v5e:2x2
jax: 0.10.0
libtpu: 0.0.40
codegen_flags: <defaults>
</compile_context>

<pallas_src>
import functools

import jax
import jax.numpy as jnp
from jax.experimental import pallas as pl
from jax.experimental.pallas import tpu as pltpu


def _round_up(x, m):
    return ((x + m - 1) // m) * m


def _cdiv(a, b):
    return -(-a // b)


def _tpu_config():
    """Generation-aware tile limits and VMEM budget."""
    kind = ""
    try:
        kind = jax.devices()[0].device_kind.lower()
    except Exception:
        pass
    vmem_cap = None
    try:
        vmem_cap = getattr(pltpu.get_tpu_info(), "vmem_capacity_bytes", None)
    except Exception:
        vmem_cap = None

    is_v7 = "v7" in kind
    big_vmem = (vmem_cap is not None and vmem_cap >= 96 * 1024 * 1024) or (
        not is_v7 and any(g in kind for g in ("v5", "v6")))

    if big_vmem:
        # v5e / v6e: 128 MiB physical VMEM, 1 TensorCore.
        return dict(tm_max=512, tk_max=2048, tn_target=1024,
                    vmem_limit=100 * 1024 * 1024, multi_core=False)
    # v7x (or unknown -> conservative): 64 MiB physical VMEM, 2 TensorCores.
    return dict(tm_max=256, tk_max=1024, tn_target=512,
                vmem_limit=48 * 1024 * 1024, multi_core=is_v7)


def _choose_tm(M, tm_max, multi_core):
    """Row tile: minimize tail waste; on v7x keep >=2 tiles for 2 TCs."""
    if M < 8:
        return max(M, 1)            # block dim == full array dim is allowed
    if M <= 128:
        tm = _round_up(M, 8)
    else:
        cands = [c for c in (512, 256, 128) if c <= tm_max] or [128]
        tm = min(cands, key=lambda c: ((-M) % c, -c))
    if multi_core and M > 8 and _cdiv(M, tm) < 2:
        tm = max(8, _round_up(_cdiv(M, 2), 8))
    return tm


def _linear_kernel(x_ref, w_ref, b_ref, o_ref, *, compute_dtype):
    # x_ref: (tm, K) native dtype | w_ref: (K, tn) compute dtype
    # b_ref: (1, tn) f32          | o_ref: (tm, tn)
    x = x_ref[...].astype(compute_dtype)          # in-kernel cast (VPU)
    acc = jnp.dot(x, w_ref[...], preferred_element_type=jnp.float32)
    o_ref[...] = (acc + b_ref[...]).astype(o_ref.dtype)


def _linear_kernel_ksplit(x_ref, w_ref, b_ref, o_ref, acc_ref, *, compute_dtype):
    # K-tiled path: accumulate over the (last) reduction grid axis in f32.
    k = pl.program_id(2)

    @pl.when(k == 0)
    def _():
        acc_ref[...] = jnp.zeros_like(acc_ref)

    x = x_ref[...].astype(compute_dtype)
    acc_ref[...] += jnp.dot(x, w_ref[...], preferred_element_type=jnp.float32)

    @pl.when(k == pl.num_programs(2) - 1)
    def _():
        o_ref[...] = (acc_ref[...] + b_ref[...]).astype(o_ref.dtype)


def _pallas_linear(x2d, weight, bias, *, compute_dtype=jnp.bfloat16,
                   tk_max=None):
    """y = x2d @ weight.T + bias via Pallas.

    x2d:    (M, K)
    weight: (N, K)   (PyTorch nn.Linear layout)
    bias:   (N,)
    """
    M, K = x2d.shape
    N = weight.shape[0]
    out_dtype = x2d.dtype
    cfg = _tpu_config()
    if tk_max is None:
        tk_max = cfg["tk_max"]

    n_pad = _round_up(N, 128)                 # lane-dense output columns
    tn = min(n_pad, cfg["tn_target"])         # N tile (multiple of 128)
    tm = _choose_tm(M, cfg["tm_max"], cfg["multi_core"])

    if K <= tk_max:
        tk, k_pad, nkt = K, K, 1              # single K tile, no padding
    else:
        tk = tk_max                           # multiple of 128
        k_pad = _round_up(K, tk)
        nkt = k_pad // tk

    # One-time weight prep (small vs activations): MXU-native (K, N) layout,
    # zero-padded K (reduction) and N (lane) tails, cast to compute dtype.
    wt = weight.T
    if k_pad != K or n_pad != N:
        wt = jnp.pad(wt, ((0, k_pad - K), (0, n_pad - N)))
    wt = wt.astype(compute_dtype)

    bp = bias.astype(jnp.float32)
    if n_pad != N:
        bp = jnp.pad(bp, (0, n_pad - N))
    bp = bp.reshape(1, n_pad)

    # x: native dtype, native M (ragged tail rows masked on output write).
    # Only the K tail must be zero-padded (neutral in the contraction).
    xp = x2d if k_pad == K else jnp.pad(x2d, ((0, 0), (0, k_pad - K)))

    m_tiles = _cdiv(M, tm)
    n_tiles = _cdiv(n_pad, tn)

    x_b = jnp.dtype(xp.dtype).itemsize
    w_b = jnp.dtype(compute_dtype).itemsize
    o_b = jnp.dtype(out_dtype).itemsize
    cost = pl.CostEstimate(
        flops=2 * M * K * N,
        transcendentals=0,
        bytes_accessed=int(M * K * x_b + K * n_pad * w_b
                           + M * n_pad * o_b + n_pad * 4))

    if nkt == 1:
        out = pl.pallas_call(
            functools.partial(_linear_kernel, compute_dtype=compute_dtype),
            out_shape=jax.ShapeDtypeStruct((M, n_pad), out_dtype),
            grid_spec=pltpu.PrefetchScalarGridSpec(
                num_scalar_prefetch=0,
                grid=(m_tiles, n_tiles),
                in_specs=[
                    pl.BlockSpec((tm, K), lambda i, j: (i, 0)),
                    pl.BlockSpec((K, tn), lambda i, j: (0, j)),
                    pl.BlockSpec((1, tn), lambda i, j: (0, j)),
                ],
                out_specs=pl.BlockSpec((tm, tn), lambda i, j: (i, j)),
            ),
            compiler_params=pltpu.CompilerParams(
                dimension_semantics=("parallel", "parallel"),
                vmem_limit_bytes=int(cfg["vmem_limit"])),
            cost_estimate=cost,
        )(xp, wt, bp)
    else:
        out = pl.pallas_call(
            functools.partial(_linear_kernel_ksplit,
                              compute_dtype=compute_dtype),
            out_shape=jax.ShapeDtypeStruct((M, n_pad), out_dtype),
            grid_spec=pltpu.PrefetchScalarGridSpec(
                num_scalar_prefetch=0,
                grid=(m_tiles, n_tiles, nkt),      # reduction axis last
                in_specs=[
                    pl.BlockSpec((tm, tk), lambda i, j, k: (i, k)),
                    pl.BlockSpec((tk, tn), lambda i, j, k: (k, j)),
                    pl.BlockSpec((1, tn), lambda i, j, k: (0, j)),
                ],
                out_specs=pl.BlockSpec((tm, tn), lambda i, j, k: (i, j)),
                scratch_shapes=[pltpu.VMEM((tm, tn), jnp.float32)],
            ),
            compiler_params=pltpu.CompilerParams(
                dimension_semantics=("parallel", "parallel", "arbitrary"),
                vmem_limit_bytes=int(cfg["vmem_limit"])),
            cost_estimate=cost,
        )(xp, wt, bp)

    return out if n_pad == N else out[:, :N]


def time_distributed(x, weight, bias, *, batch_first=False,
                     compute_dtype=jnp.bfloat16):
    """Pallas-backed TimeDistributed(Linear) forward."""
    if x.ndim <= 2:
        x2d = x if x.ndim == 2 else x.reshape(1, -1)
        y = _pallas_linear(x2d, weight, bias, compute_dtype=compute_dtype)
        return y if x.ndim == 2 else y.reshape(-1)

    # Flatten all leading dims onto the row axis (== .view(-1, x.size(-1))).
    x_reshape = x.reshape(-1, x.shape[-1])
    y = _pallas_linear(x_reshape, weight, bias, compute_dtype=compute_dtype)

    if batch_first:
        return y.reshape(x.shape[0], -1, y.shape[-1])
    else:
        return y.reshape(-1, x.shape[1], y.shape[-1])


if __name__ == "__main__":
    # Small deterministic example: seq T=8, batch B=2, in_features F=32, out=64
    T, B, F, OUT = 8, 2, 32, 64
    key = jax.random.PRNGKey(0)
    kx, kw, kb = jax.random.split(key, 3)

    x = jax.random.normal(kx, (T, B, F), dtype=jnp.float32)      # (seq, batch, feat)
    weight = jax.random.normal(kw, (OUT, F), dtype=jnp.float32) * 0.05
    bias = jax.random.normal(kb, (OUT,), dtype=jnp.float32) * 0.01

    # 3-D path (batch_first=False)
    fwd = jax.jit(functools.partial(time_distributed, batch_first=False))
    y = fwd(x, weight, bias)
    jax.block_until_ready(y)
    y_ref = (x.reshape(-1, F) @ weight.T + bias).reshape(-1, B, OUT)
    assert y.shape == (T, B, OUT), y.shape
    # bf16 operands with f32 accumulation -> relaxed tolerance vs f32 reference.
    assert jnp.allclose(y, y_ref, atol=3e-2, rtol=3e-2)

    # 3-D path (batch_first=True)
    fwd_bf = jax.jit(functools.partial(time_distributed, batch_first=True))
    y_bf = fwd_bf(x, weight, bias)
    jax.block_until_ready(y_bf)
    y_bf_ref = (x.reshape(-1, F) @ weight.T + bias).reshape(T, -1, OUT)
    assert y_bf.shape == (T, B, OUT), y_bf.shape
    assert jnp.allclose(y_bf, y_bf_ref, atol=3e-2, rtol=3e-2)

    # 2-D path
    y2 = jax.jit(time_distributed)(x[:, 0, :], weight, bias)
    jax.block_until_ready(y2)
    assert y2.shape == (T, OUT)
    assert jnp.allclose(y2, x[:, 0, :] @ weight.T + bias, atol=3e-2, rtol=3e-2)

    # 1-D path (single row; block dims equal the full array dims)
    y1 = jax.jit(time_distributed)(x[0, 0, :], weight, bias)
    jax.block_until_ready(y1)
    assert y1.shape == (OUT,)
    assert jnp.allclose(y1, x[0, 0, :] @ weight.T + bias, atol=3e-2, rtol=3e-2)

    # Force the K-split (f32-accumulator) path with a small K=256 / tk=128 case
    kx2, kw2 = jax.random.split(kx)
    Kbig = 256
    x_ks = jax.random.normal(kx2, (T * B, Kbig), dtype=jnp.float32)
    w_ks = jax.random.normal(kw2, (OUT, Kbig), dtype=jnp.float32) * 0.02
    y_ks = jax.jit(functools.partial(_pallas_linear, tk_max=128))(
        x_ks, w_ks, bias)
    jax.block_until_ready(y_ks)
    y_ks_ref = x_ks @ w_ks.T + bias
    assert y_ks.shape == (T * B, OUT)
    assert jnp.allclose(y_ks, y_ks_ref, atol=5e-2, rtol=5e-2)

    print("KERNEL_OK")
</pallas_src>

<mosaic_0001>
module attributes {stable_mosaic.version = 11 : i64} {
  func.func @_linear_kernel(%arg0: i32, %arg1: i32, %arg2: memref<16x32xf32, #tpu.memory_space<vmem>>, %arg3: memref<32x128xbf16, #tpu.memory_space<vmem>>, %arg4: memref<1x128xf32, #tpu.memory_space<vmem>>, %arg5: memref<16x128xf32, #tpu.memory_space<vmem>>) attributes {dimension_semantics = [#tpu.dimension_semantics<parallel>, #tpu.dimension_semantics<parallel>], iteration_bounds = array<i64: 1, 1>, scalar_prefetch = 0 : i64, scratch_operands = 0 : i64, tpu.core_type = #tpu.core_type<tc>, window_params = [{transform_indices = @transform_0, window_bounds = array<i64: 16, 32>}, {transform_indices = @transform_1, window_bounds = array<i64: 32, 128>}, {transform_indices = @transform_2, window_bounds = array<i64: 1, 128>}, {transform_indices = @transform_3, window_bounds = array<i64: 16, 128>}]} {
    %c0 = arith.constant 0 : index
    %c0_0 = arith.constant 0 : index
    %0 = vector.load %arg2[%c0, %c0_0] : memref<16x32xf32, #tpu.memory_space<vmem>>, vector<16x32xf32>
    %1 = arith.truncf %0 : vector<16x32xf32> to vector<16x32xbf16>
    %c0_1 = arith.constant 0 : index
    %c0_2 = arith.constant 0 : index
    %2 = vector.load %arg3[%c0_1, %c0_2] : memref<32x128xbf16, #tpu.memory_space<vmem>>, vector<32x128xbf16>
    %cst = arith.constant dense<0.000000e+00> : vector<16x128xf32>
    %3 = tpu.matmul %1, %2, %cst {dimension_numbers = #tpu.dot_dimension_numbers<[1], [0], [0], [1], [0, 0, 1, 1], [], []>} : vector<16x32xbf16>, vector<32x128xbf16>, vector<16x128xf32> -> vector<16x128xf32>
    %c0_3 = arith.constant 0 : index
    %c0_4 = arith.constant 0 : index
    %4 = vector.load %arg4[%c0_3, %c0_4] : memref<1x128xf32, #tpu.memory_space<vmem>>, vector<1x128xf32>
    %5 = vector.broadcast %4 : vector<1x128xf32> to vector<16x128xf32>
    %6 = arith.addf %3, %5 : vector<16x128xf32>
    %c0_5 = arith.constant 0 : index
    %c0_6 = arith.constant 0 : index
    %7 = vector.load %arg5[%c0_5, %c0_6] : memref<16x128xf32, #tpu.memory_space<vmem>>, vector<16x128xf32>
    tpu.vector_store %arg5[%c0_5, %c0_6], %6 {strides = array<i32>} : memref<16x128xf32, #tpu.memory_space<vmem>>, vector<16x128xf32>,
    return
  }
  func.func @transform_0(%arg0: i32, %arg1: i32) -> (i32, i32) {
    %c0_i32 = arith.constant 0 : i32
    %c0_i32_0 = arith.constant 0 : i32
    return %arg0, %c0_i32 : i32, i32
  }
  func.func @transform_1(%arg0: i32, %arg1: i32) -> (i32, i32) {
    %c0_i32 = arith.constant 0 : i32
    %c0_i32_0 = arith.constant 0 : i32
    return %c0_i32, %arg1 : i32, i32
  }
  func.func @transform_2(%arg0: i32, %arg1: i32) -> (i32, i32) {
    %c0_i32 = arith.constant 0 : i32
    %c0_i32_0 = arith.constant 0 : i32
    return %c0_i32, %arg1 : i32, i32
  }
  func.func @transform_3(%arg0: i32, %arg1: i32) -> (i32, i32) {
    %c0_i32 = arith.constant 0 : i32
    return %arg0, %arg1 : i32, i32
  }
}

</mosaic_0001>

<llo_original>
// kernel: time_distributed.1
$region0: #{time_distributed.1}
  #allocation0 [shape = 'u32[]', space=smem, size = 0x4, offset = 0x4, fixed_abs, tag = 'smem constant byte address 0x4 - core index']
  #allocation1 [shape = 'u32[72,128]{1,0:T(1,128)}', space=vmem, size = 0x9000, scoped, tag = 'internal scratch']
  %s0 = inlined_call_operand.vmem [shape: f32[16,32], index: 0, kind: input, shape index: {}]
  %s1 = inlined_call_operand.vmem [shape: bf16[32,128], index: 1, kind: input, shape index: {}]
  %s2 = inlined_call_operand.vmem [shape: f32[1,128], index: 2, kind: input, shape index: {}]
  %s3 = inlined_call_operand.hbm [shape: f32[16,128], index: 3, kind: output, shape index: {}]
  %s4 = sld [smem:[#allocation0]]
  $region22: #{time_distributed.1} parent=0
    _
  %s6 = ssub.s32 1, %s4
  %s7 = scalar_select 0, %s6, %s4
  $region1: #{time_distributed.1} parent=0
    #allocation2 [shape = 'u8[8192]{0}', space=vmem, size = 0x2000, scoped, tag = 'output window, operand 0, single buffered']
    #allocation3 [shape = 's32[1]{0}', space=sflag, size = 0x4, scoped, tag = 'scoped memory for time_distributed.1']
    %8 = vsyncpa [#allocation3], 0
    // Predicated region
    $region2: #{time_distributed.1} parent=1 // pred_check
      _
    $region3: #{time_distributed.1} parent=1 // pred_check_branch
      %10 = sbr.rel (0) target = $region5
    $region4: #{time_distributed.1} parent=1 // pred_region
      _
    $region5: #{time_distributed.1} parent=1 // pred_fallthru
      _
    // Predicated region
    $region6: #{time_distributed.1} parent=1 // pred_check
      _
    $region7: #{time_distributed.1} parent=1 // pred_check_branch
      %12 = sbr.rel (0) target = $region9
    $region8: #{time_distributed.1} parent=1 // pred_region
      _
    $region9: #{time_distributed.1} parent=1 // pred_fallthru
      _
    // Predicated region
    $region10: #{time_distributed.1} parent=1 // pred_check
      _
    $region11: #{time_distributed.1} parent=1 // pred_check_branch
      %14 = sbr.rel (0) target = $region13
    $region12: #{time_distributed.1} parent=1 // pred_region
      _
    $region13: #{time_distributed.1} parent=1 // pred_fallthru
      _
    %v16 = vld [vmem:[%s0] sm:$0xff]
    %v17 = vld [vmem:[%s0 + $0x8] sm:$0xff]
    %v18 = vpack.c.bf16 %v17, %v16
    %v19 = vld [vmem:[%s1] sm:$0xf]
    %v20 = vld [vmem:[%s1 + $0x4] sm:$0xf]
    %v21 = vld [vmem:[%s1 + $0x8] sm:$0xf]
    %v22 = vld [vmem:[%s1 + $0xc] sm:$0xf]
    %v23 = vld [vmem:[%s2] sm:$0x1]
    %v25 = vperm.slane %v23, 0
    %v31 = vunpack.c.l.b16 %v19
    %v32 = vunpack.c.l.b16 %v20
    %v33 = vunpack.c.l.b16 %v21
    %v34 = vunpack.c.l.b16 %v22
    %v35 = vpack.c.b16 %v32, %v31
    %v36 = vpack.c.b16 %v34, %v33
    %vm39 = vcmask 261120
    %v41 = vsel %vm39, %v18, 0
    %43 = vmatpush.bf16.msra.mxu0 0
    %44 = vmatpush.bf16.msra.mxu0 0
    %45 = vmatpush.bf16.msra.mxu0 0
    %46 = vmatpush.bf16.msra.mxu0 0
    %47 = vmatpush.bf16.msra.mxu0 0
    %48 = vmatpush.bf16.msra.mxu0 0
    %49 = vmatpush.bf16.msra.mxu0 %v36
    %50 = vmatpush.bf16.msra.mxu0 %v35
    %51 = vmatmul.bf16.gmra.mxu0 %v41
    %v52 = vpop.f32.mrf.mxu0
    %v53 = vadd.f32 %v25, %v52
    %v54 = vpop.f32.mrf.mxu0
    %v55 = vadd.f32 %v25, %v54
    %56 = vdwg.mxu0
    %57 = vst [vmem:[#allocation2] sm:$0xff] %v53
    %58 = vst [vmem:[#allocation2 + $0x8] sm:$0xff] %v55
    // Predicated region
    $region14: #{time_distributed.1} parent=1 // pred_check
      _
    $region15: #{time_distributed.1} parent=1 // pred_check_branch
      %60 = sbr.rel (0) target = $region17
    $region16: #{time_distributed.1} parent=1 // pred_region
      %62 = vsyncadd [#allocation3], 0
      %s63 = sshll.u32 [#allocation2], 4
      %s64 = int_to_ptr.vmem [resolvable:$true] %s63
      %s65 = sshll.u32 %s3, 4
      %s66 = int_to_ptr.hbm [resolvable:$true] %s65
      %71 = dma.vmem_to_hbm [thread:$0]  %s64, 256, %s66, [#allocation3], 128, 128, 8
    $region17: #{time_distributed.1} parent=1 // pred_fallthru
      _
    // Predicated region
    $region18: #{time_distributed.1} parent=1 // pred_check
      _
    $region19: #{time_distributed.1} parent=1 // pred_check_branch
      %73 = sbr.rel (0) target = $region21
    $region20: #{time_distributed.1} parent=1 // pred_region
      %75 = dma.done [#allocation3], 256
    $region21: #{time_distributed.1} parent=1 // pred_fallthru
      _
    %76 = vsyncpa [#allocation3], 1

</llo_original>
